<compile_context>
chip_gen: v6e
topology: v6e:2x2x1
jax: 0.10.0
libtpu: 0.0.40
codegen_flags: <defaults>
</compile_context>

<pallas_src>
import functools
import math

import jax
import jax.numpy as jnp
from jax.experimental import pallas as pl
from jax.experimental.pallas import tpu as pltpu


def _vloss_kernel(x_ref, t_ref, mu_ref, lv_ref,
                  tsum_ref, cnt_ref, s0_ref, s1_ref, kld_ref):
    # Grid = (core, target-block, repeat). Outputs are resident accumulators
    # across the two inner ("arbitrary") axes; zero them on the first step.
    @pl.when((pl.program_id(1) == 0) & (pl.program_id(2) == 0))
    def _():
        tsum_ref[...] = jnp.zeros_like(tsum_ref)
        cnt_ref[...] = jnp.zeros_like(cnt_ref)
        s0_ref[...] = jnp.zeros_like(s0_ref)
        s1_ref[...] = jnp.zeros_like(s1_ref)
        kld_ref[...] = jnp.zeros_like(kld_ref)

    x = x_ref[...].astype(jnp.float32)
    t = t_ref[...].astype(jnp.float32)

    good = t == t                              # NaN-target mask
    gmask = good.astype(jnp.float32)
    ts = jnp.where(good, t, 0.0)               # NaN-safe target

    # Numerically stable BCE-with-logits (same form PyTorch uses):
    #   max(x, 0) - x*t + log(1 + exp(-|x|))
    # TODO(synk): optionally run exp/log1p in bf16 on v6e/v7x (bf16 EUP ~2x)
    # behind an accuracy flag; v5e has no bf16 EUP path so keep f32 there.
    softplus = jnp.log1p(jnp.exp(-jnp.abs(x)))
    bce = (jnp.maximum(x, 0.0) - x * ts + softplus) * gmask

    def sum8(v):
        # (tile, L) -> (1, 8, L): reduce only down to 8 sublanes per step;
        # the final 8->1 reduction happens once in the JAX glue. Avoids the
        # per-step cross-sublane (XLU) reduce and 1-sublane masked stores.
        r, l = v.shape
        return jnp.sum(v.reshape(r // 8, 8, l), axis=0)[None]

    tsum_ref[...] += sum8(ts)
    cnt_ref[...] += sum8(gmask)
    s0_ref[...] += sum8(bce)
    s1_ref[...] += sum8(ts * bce)
    # TODO(synk): on v7x these axis-0 column sums could be offloaded to the
    # otherwise-idle MXU (ones-vector matmul) to relieve VALU pressure.

    # KL divergence partials, kept lane/sublane-wide (final sum in glue).
    mu = mu_ref[...].astype(jnp.float32)
    lv = lv_ref[...].astype(jnp.float32)
    kld_ref[...] += sum8(1.0 + lv - mu * mu - jnp.exp(lv))


def _round_up(v, m):
    return -(-v // m) * m


def _round_down(v, m):
    return (v // m) * m


def _tpu_generation():
    try:
        kind = jax.devices()[0].device_kind.lower()
    except Exception:
        return "unknown"
    if "v7" in kind or "7x" in kind:
        return "v7x"
    for g in ("v6", "v5", "v4", "v3", "v2"):
        if g in kind:
            return g
    return "unknown"


def _choose_fold(n0, c, lane_target=512):
    """Fold factor F for the (N, C) -> (N/F, F*C) lane-dense reshape.

    Prefer (in order): padding-free (F | n0, (n0/F) % 8 == 0) AND lane-dense
    (F*C % 128 == 0); then padding-free; then lane-dense (caller pads)."""
    fmax = max(1, min(n0, lane_target // max(c, 1)))
    best8 = None
    for f in range(fmax, 0, -1):
        if n0 % f == 0 and (n0 // f) % 8 == 0:
            if best8 is None:
                best8 = f
            if (f * c) % 128 == 0:
                return f
    if best8 is not None:
        return best8
    f128 = 128 // math.gcd(c, 128)
    if f128 <= fmax:
        return (fmax // f128) * f128
    return fmax


@functools.partial(jax.jit, static_argnames=("w",))
def vloss_pallas(x, target, mu, logvar, *, w=0.0):
    n, c = x.shape
    d = mu.shape[1]
    assert mu.shape[0] == n and logvar.shape == mu.shape

    if not jnp.issubdtype(target.dtype, jnp.floating):
        target = target.astype(jnp.float32)

    # torch: target.repeat(10, 1) -- never materialized; handled by the grid.
    n0 = target.shape[0]
    repeat = 10 if 10 * n0 == n else 1
    assert repeat * n0 == n, "target rows must equal N or N/10"

    gen = _tpu_generation()
    small_vmem = gen in ("v7x", "unknown")        # v7x: 64 MiB per TC
    stream_budget = (24 << 20) if small_vmem else (40 << 20)
    vmem_cap = (48 << 20) if small_vmem else (100 << 20)
    want_two_cores = gen == "v7x"                 # only v7x has 2 TCs/chip

    # Lane-dense fold: (N, C) -> (N/F, F*C) is a free row-major reshape that
    # packs F batch rows onto the 128-lane axis when C << 128.
    fold = _choose_fold(n0, c)
    lanes_x = fold * c
    lanes_m = fold * d

    # Streamed bytes per folded row from the ACTUAL input dtypes (bf16 inputs
    # halve HBM traffic; the kernel upcasts per tile).
    bytes_per_row = fold * (
        c * (x.dtype.itemsize + target.dtype.itemsize)
        + d * (mu.dtype.itemsize + logvar.dtype.itemsize))

    # Tile rows: biggest 8-aligned step inside the double-buffered budget.
    rows_t_min = -(-n0 // fold)                   # folded target rows needed
    budget_rows = max(8, _round_down(stream_budget // (2 * bytes_per_row), 8))
    tile = max(8, min(budget_rows, _round_up(rows_t_min, 8)))
    tgt_blocks = -(-rows_t_min // tile)

    ncores = 1
    if want_two_cores and tgt_blocks >= 2:
        tgt_blocks = _round_up(tgt_blocks, 2)     # split evenly across 2 TCs
        ncores = 2
    jpc = tgt_blocks // ncores

    rows_t = tgt_blocks * tile                    # folded target rows (padded)
    n0p = rows_t * fold
    rows_x = repeat * rows_t
    n_rows_p = repeat * n0p

    # Pad with rows that contribute exactly zero: NaN targets are dropped
    # (tsum/cnt/S0/S1 all 0) and mu=logvar=0 gives 1 + 0 - 0 - exp(0) = 0.
    if n0p != n0:
        pad0 = n0p - n0
        target = jnp.pad(target, ((0, pad0), (0, 0)),
                         constant_values=jnp.nan)
        if repeat == 1:
            x = jnp.pad(x, ((0, pad0), (0, 0)))
            mu = jnp.pad(mu, ((0, pad0), (0, 0)))
            logvar = jnp.pad(logvar, ((0, pad0), (0, 0)))
        else:
            # Per-segment padding keeps "x row i pairs with target row i % n0p".
            x = jnp.pad(x.reshape(repeat, n0, c),
                        ((0, 0), (0, pad0), (0, 0))).reshape(n_rows_p, c)
            mu = jnp.pad(mu.reshape(repeat, n0, d),
                         ((0, 0), (0, pad0), (0, 0))).reshape(n_rows_p, d)
            logvar = jnp.pad(logvar.reshape(repeat, n0, d),
                             ((0, 0), (0, pad0), (0, 0))).reshape(n_rows_p, d)

    xf = x.reshape(rows_x, lanes_x)
    tf = target.reshape(rows_t, lanes_x)
    muf = mu.reshape(rows_x, lanes_m)
    lvf = logvar.reshape(rows_x, lanes_m)

    # Exact-tiling invariants (the target/x block correspondence relies on
    # tile | rows_t and n0p == rows_t * fold -- keep these asserts).
    assert rows_t == tgt_blocks * tile and jpc * ncores == tgt_blocks
    assert rows_x == repeat * rows_t and n0p == rows_t * fold
    assert tile % 8 == 0

    # Grid = (core, target block, repeat). The target block index is constant
    # across the innermost axis, so Pallas fetches each target block ONCE and
    # reuses it for all `repeat` x segments (10x fewer target HBM reads).
    def x_map(p, j, r):
        return (r * tgt_blocks + p * jpc + j, 0)

    def t_map(p, j, r):
        return (p * jpc + j, 0)

    out_map = lambda p, j, r: (p, 0, 0)           # one 8-row accumulator / core
    acc_spec_x = pl.BlockSpec((1, 8, lanes_x), out_map)
    acc_spec_m = pl.BlockSpec((1, 8, lanes_m), out_map)

    out_shape = (
        jax.ShapeDtypeStruct((ncores, 8, lanes_x), jnp.float32),   # sum(t)
        jax.ShapeDtypeStruct((ncores, 8, lanes_x), jnp.float32),   # count
        jax.ShapeDtypeStruct((ncores, 8, lanes_x), jnp.float32),   # sum(bce)
        jax.ShapeDtypeStruct((ncores, 8, lanes_x), jnp.float32),   # sum(t*bce)
        jax.ShapeDtypeStruct((ncores, 8, lanes_m), jnp.float32),   # KLD partials
    )

    # Scoped-VMEM limit from actual double-buffered tile bytes + accumulators
    # + margin, capped well below the per-TC physical ceiling.
    acc_bytes = 2 * 4 * 8 * (4 * lanes_x + lanes_m)
    vmem_limit = int(min(vmem_cap,
                         max(16 << 20,
                             2 * bytes_per_row * tile + acc_bytes + (8 << 20))))

    dim_sem = ((pltpu.CORE_PARALLEL if ncores == 2 else pltpu.ARBITRARY),
               pltpu.ARBITRARY, pltpu.ARBITRARY)

    tsum, cnt, s0, s1, klds = pl.pallas_call(
        _vloss_kernel,
        out_shape=out_shape,
        grid_spec=pltpu.PrefetchScalarGridSpec(
            num_scalar_prefetch=0,
            grid=(ncores, jpc, repeat),
            in_specs=[
                pl.BlockSpec((tile, lanes_x), x_map),
                pl.BlockSpec((tile, lanes_x), t_map),
                pl.BlockSpec((tile, lanes_m), x_map),
                pl.BlockSpec((tile, lanes_m), x_map),
            ],
            out_specs=[acc_spec_x, acc_spec_x, acc_spec_x, acc_spec_x,
                       acc_spec_m],
        ),
        compiler_params=pltpu.CompilerParams(
            dimension_semantics=dim_sem,
            vmem_limit_bytes=vmem_limit,
        ),
    )(xf, tf, muf, lvf)

    def unfold(acc, width):                       # (ncores,8,F*width) -> (width,)
        return jnp.sum(acc.reshape(-1, fold, width), axis=(0, 1))

    tsum_c, cnt_c = unfold(tsum, c), unfold(cnt, c)
    s0_c, s1_c = unfold(s0, c), unfold(s1, c)
    kld_sum = jnp.sum(klds)

    # Global p, s statistics (torch: p = int(target2.sum()), s = numel).
    # TODO(synk): f32 counts lose integer exactness above ~2^24 valid
    # elements; switch count/sum partials to int32/f64 if such sizes appear.
    s_tot = jnp.sum(cnt_c)
    p_tot = jnp.trunc(jnp.sum(tsum_c))
    normal = (p_tot != 0.0) & (p_tot != s_tot)
    b = jnp.where(normal, s_tot / jnp.where(normal, s_tot - p_tot, 1.0), 1.0)
    a = jnp.where(normal, s_tot / jnp.where(normal, p_tot, 1.0) - b, 1.0)

    # Per-class weighted BCE mean over the non-NaN elements:
    #   mean((a*t + b) * bce) = (a*S1 + b*S0) / cnt
    f_cls = (a * s1_c + b * s0_c) / cnt_c         # NaN if a class has no data
    fgood = ~jnp.isnan(f_cls)                     # torch: f = f[f == f]
    bce_mean = jnp.sum(jnp.where(fgood, f_cls, 0.0)) / jnp.sum(fgood)

    kld = -0.5 * kld_sum
    return bce_mean + w * kld


def vloss_reference(x, target, mu, logvar, *, w=0.0):
    """Pure-JAX reference replicating the PyTorch semantics."""
    if 10 * target.shape[0] == x.shape[0]:
        target = jnp.tile(target, (10, 1))
    good = ~jnp.isnan(target)
    ts = jnp.where(good, target, 0.0)
    s = jnp.sum(good).astype(jnp.float32)
    p = jnp.trunc(jnp.sum(ts))
    normal = (p != 0.0) & (p != s)
    b = jnp.where(normal, s / jnp.where(normal, s - p, 1.0), 1.0)
    a = jnp.where(normal, s / jnp.where(normal, p, 1.0) - b, 1.0)
    bce = jnp.maximum(x, 0.0) - x * ts + jnp.log1p(jnp.exp(-jnp.abs(x)))
    wl = jnp.where(good, (a * ts + b) * bce, 0.0)
    cnt = jnp.sum(good, axis=0).astype(jnp.float32)
    f = jnp.sum(wl, axis=0) / cnt
    fgood = ~jnp.isnan(f)
    bce_mean = jnp.sum(jnp.where(fgood, f, 0.0)) / jnp.sum(fgood)
    kld = -0.5 * jnp.sum(1.0 + logvar - mu * mu - jnp.exp(logvar))
    return bce_mean + w * kld


if __name__ == "__main__":
    W = 0.5   # VLoss(w=...) weight on the KL term (module default is 0)

    # --- Test 1: small direct shapes (batch=16, classes=4, latent=32) -------
    N, C, D = 16, 4, 32
    k1, k2, k3, k4 = jax.random.split(jax.random.PRNGKey(0), 4)
    x = jax.random.normal(k1, (N, C), dtype=jnp.float32)              # logits
    target = jax.random.bernoulli(k2, 0.3, (N, C)).astype(jnp.float32)
    target = target.at[3, 1].set(jnp.nan)                             # NaN mask
    mu = jax.random.normal(k3, (N, D), dtype=jnp.float32)
    logvar = 0.1 * jax.random.normal(k4, (N, D), dtype=jnp.float32)

    out = jax.block_until_ready(vloss_pallas(x, target, mu, logvar, w=W))
    ref = vloss_reference(x, target, mu, logvar, w=W)
    assert jnp.allclose(out, ref, rtol=1e-4, atol=1e-4), (out, ref)

    # --- Test 2: repeat-10 path (target has N/10 rows), multi-step grid -----
    N0 = 64
    N2 = 10 * N0
    k5, k6, k7, k8 = jax.random.split(jax.random.PRNGKey(1), 4)
    x2 = jax.random.normal(k5, (N2, C), dtype=jnp.float32)
    t2 = jax.random.bernoulli(k6, 0.3, (N0, C)).astype(jnp.float32)
    t2 = t2.at[5, 2].set(jnp.nan)
    mu2 = jax.random.normal(k7, (N2, D), dtype=jnp.float32)
    lv2 = 0.1 * jax.random.normal(k8, (N2, D), dtype=jnp.float32)

    out2 = jax.block_until_ready(vloss_pallas(x2, t2, mu2, lv2, w=W))
    ref2 = vloss_reference(x2, t2, mu2, lv2, w=W)
    assert jnp.allclose(out2, ref2, rtol=1e-4, atol=1e-4), (out2, ref2)

    print("KERNEL_OK")
</pallas_src>

<mosaic_0001>
module attributes {stable_mosaic.version = 11 : i64} {
  func.func @_vloss_kernel(%arg0: i32, %arg1: i32, %arg2: i32, %arg3: memref<8x8xf32, #tpu.memory_space<vmem>>, %arg4: memref<8x8xf32, #tpu.memory_space<vmem>>, %arg5: memref<8x64xf32, #tpu.memory_space<vmem>>, %arg6: memref<8x64xf32, #tpu.memory_space<vmem>>, %arg7: memref<1x8x8xf32, #tpu.memory_space<vmem>>, %arg8: memref<1x8x8xf32, #tpu.memory_space<vmem>>, %arg9: memref<1x8x8xf32, #tpu.memory_space<vmem>>, %arg10: memref<1x8x8xf32, #tpu.memory_space<vmem>>, %arg11: memref<1x8x64xf32, #tpu.memory_space<vmem>>) attributes {dimension_semantics = [#tpu.dimension_semantics<arbitrary>, #tpu.dimension_semantics<arbitrary>, #tpu.dimension_semantics<arbitrary>], iteration_bounds = array<i64: 1, 1, 1>, scalar_prefetch = 0 : i64, scratch_operands = 0 : i64, tpu.core_type = #tpu.core_type<tc>, window_params = [{transform_indices = @transform_0, window_bounds = array<i64: 8, 8>}, {transform_indices = @transform_1, window_bounds = array<i64: 8, 8>}, {transform_indices = @transform_2, window_bounds = array<i64: 8, 64>}, {transform_indices = @transform_3, window_bounds = array<i64: 8, 64>}, {transform_indices = @transform_4, window_bounds = array<i64: 1, 8, 8>}, {transform_indices = @transform_5, window_bounds = array<i64: 1, 8, 8>}, {transform_indices = @transform_6, window_bounds = array<i64: 1, 8, 8>}, {transform_indices = @transform_7, window_bounds = array<i64: 1, 8, 8>}, {transform_indices = @transform_8, window_bounds = array<i64: 1, 8, 64>}]} {
    %c0_i32 = arith.constant 0 : i32
    %0 = arith.cmpi eq, %arg1, %c0_i32 : i32
    %c0_i32_0 = arith.constant 0 : i32
    %1 = arith.cmpi eq, %arg2, %c0_i32_0 : i32
    %2 = arith.andi %0, %1 : i1
    %3 = arith.extui %2 : i1 to i32
    %c0_i32_1 = arith.constant 0 : i32
    %4 = arith.cmpi ne, %3, %c0_i32_1 : i32
    scf.if %4 {
      %cst_47 = arith.constant 0.000000e+00 : f32
      %62 = vector.broadcast %cst_47 : f32 to vector<1x8x8xf32>
      %c0_48 = arith.constant 0 : index
      %c0_49 = arith.constant 0 : index
      %c0_50 = arith.constant 0 : index
      %63 = vector.load %arg7[%c0_48, %c0_49, %c0_50] : memref<1x8x8xf32, #tpu.memory_space<vmem>>, vector<1x8x8xf32>
      tpu.vector_store %arg7[%c0_48, %c0_49, %c0_50], %62 {strides = array<i32>} : memref<1x8x8xf32, #tpu.memory_space<vmem>>, vector<1x8x8xf32>,
      %cst_51 = arith.constant 0.000000e+00 : f32
      %64 = vector.broadcast %cst_51 : f32 to vector<1x8x8xf32>
      %c0_52 = arith.constant 0 : index
      %c0_53 = arith.constant 0 : index
      %c0_54 = arith.constant 0 : index
      %65 = vector.load %arg8[%c0_52, %c0_53, %c0_54] : memref<1x8x8xf32, #tpu.memory_space<vmem>>, vector<1x8x8xf32>
      tpu.vector_store %arg8[%c0_52, %c0_53, %c0_54], %64 {strides = array<i32>} : memref<1x8x8xf32, #tpu.memory_space<vmem>>, vector<1x8x8xf32>,
      %cst_55 = arith.constant 0.000000e+00 : f32
      %66 = vector.broadcast %cst_55 : f32 to vector<1x8x8xf32>
      %c0_56 = arith.constant 0 : index
      %c0_57 = arith.constant 0 : index
      %c0_58 = arith.constant 0 : index
      %67 = vector.load %arg9[%c0_56, %c0_57, %c0_58] : memref<1x8x8xf32, #tpu.memory_space<vmem>>, vector<1x8x8xf32>
      tpu.vector_store %arg9[%c0_56, %c0_57, %c0_58], %66 {strides = array<i32>} : memref<1x8x8xf32, #tpu.memory_space<vmem>>, vector<1x8x8xf32>,
      %cst_59 = arith.constant 0.000000e+00 : f32
      %68 = vector.broadcast %cst_59 : f32 to vector<1x8x8xf32>
      %c0_60 = arith.constant 0 : index
      %c0_61 = arith.constant 0 : index
      %c0_62 = arith.constant 0 : index
      %69 = vector.load %arg10[%c0_60, %c0_61, %c0_62] : memref<1x8x8xf32, #tpu.memory_space<vmem>>, vector<1x8x8xf32>
      tpu.vector_store %arg10[%c0_60, %c0_61, %c0_62], %68 {strides = array<i32>} : memref<1x8x8xf32, #tpu.memory_space<vmem>>, vector<1x8x8xf32>,
      %cst_63 = arith.constant 0.000000e+00 : f32
      %70 = vector.broadcast %cst_63 : f32 to vector<1x8x64xf32>
      %c0_64 = arith.constant 0 : index
      %c0_65 = arith.constant 0 : index
      %c0_66 = arith.constant 0 : index
      %71 = vector.load %arg11[%c0_64, %c0_65, %c0_66] : memref<1x8x64xf32, #tpu.memory_space<vmem>>, vector<1x8x64xf32>
      tpu.vector_store %arg11[%c0_64, %c0_65, %c0_66], %70 {strides = array<i32>} : memref<1x8x64xf32, #tpu.memory_space<vmem>>, vector<1x8x64xf32>,
    } else {
    }
    %c0 = arith.constant 0 : index
    %c0_2 = arith.constant 0 : index
    %5 = vector.load %arg3[%c0, %c0_2] : memref<8x8xf32, #tpu.memory_space<vmem>>, vector<8x8xf32>
    %c0_3 = arith.constant 0 : index
    %c0_4 = arith.constant 0 : index
    %6 = vector.load %arg4[%c0_3, %c0_4] : memref<8x8xf32, #tpu.memory_space<vmem>>, vector<8x8xf32>
    %7 = arith.cmpf oeq, %6, %6 : vector<8x8xf32>
    %8 = arith.extui %7 : vector<8x8xi1> to vector<8x8xi32>
    %9 = arith.sitofp %8 : vector<8x8xi32> to vector<8x8xf32>
    %cst = arith.constant 0.000000e+00 : f32
    %10 = vector.broadcast %cst : f32 to vector<8x8xf32>
    %11 = arith.select %7, %6, %10 : vector<8x8xi1>, vector<8x8xf32>
    %12 = math.absf %5 : vector<8x8xf32>
    %cst_5 = arith.constant 0.000000e+00 : f32
    %13 = vector.broadcast %cst_5 : f32 to vector<8x8xf32>
    %14 = arith.subf %13, %12 : vector<8x8xf32>
    %15 = math.exp %14 : vector<8x8xf32>
    %16 = math.log1p %15 : vector<8x8xf32>
    %cst_6 = arith.constant 0.000000e+00 : f32
    %17 = vector.broadcast %cst_6 : f32 to vector<8x8xf32>
    %18 = arith.maximumf %5, %17 : vector<8x8xf32>
    %19 = arith.mulf %5, %11 : vector<8x8xf32>
    %20 = arith.subf %18, %19 : vector<8x8xf32>
    %21 = arith.addf %20, %16 : vector<8x8xf32>
    %22 = arith.mulf %21, %9 : vector<8x8xf32>
    %c0_7 = arith.constant 0 : index
    %c0_8 = arith.constant 0 : index
    %c0_9 = arith.constant 0 : index
    %23 = vector.load %arg7[%c0_7, %c0_8, %c0_9] : memref<1x8x8xf32, #tpu.memory_space<vmem>>, vector<1x8x8xf32>
    %24 = vector.shape_cast %11 : vector<8x8xf32> to vector<1x8x8xf32>
    %cst_10 = arith.constant dense<0.000000e+00> : vector<8x8xf32>
    %25 = vector.multi_reduction <add>, %24, %cst_10 [0] : vector<1x8x8xf32> to vector<8x8xf32>
    %26 = vector.shape_cast %25 : vector<8x8xf32> to vector<1x8x8xf32>
    %27 = arith.addf %23, %26 : vector<1x8x8xf32>
    %c0_11 = arith.constant 0 : index
    %c0_12 = arith.constant 0 : index
    %c0_13 = arith.constant 0 : index
    %28 = vector.load %arg7[%c0_11, %c0_12, %c0_13] : memref<1x8x8xf32, #tpu.memory_space<vmem>>, vector<1x8x8xf32>
    tpu.vector_store %arg7[%c0_11, %c0_12, %c0_13], %27 {strides = array<i32>} : memref<1x8x8xf32, #tpu.memory_space<vmem>>, vector<1x8x8xf32>,
    %c0_14 = arith.constant 0 : index
    %c0_15 = arith.constant 0 : index
    %c0_16 = arith.constant 0 : index
    %29 = vector.load %arg8[%c0_14, %c0_15, %c0_16] : memref<1x8x8xf32, #tpu.memory_space<vmem>>, vector<1x8x8xf32>
    %30 = vector.shape_cast %9 : vector<8x8xf32> to vector<1x8x8xf32>
    %cst_17 = arith.constant dense<0.000000e+00> : vector<8x8xf32>
    %31 = vector.multi_reduction <add>, %30, %cst_17 [0] : vector<1x8x8xf32> to vector<8x8xf32>
    %32 = vector.shape_cast %31 : vector<8x8xf32> to vector<1x8x8xf32>
    %33 = arith.addf %29, %32 : vector<1x8x8xf32>
    %c0_18 = arith.constant 0 : index
    %c0_19 = arith.constant 0 : index
    %c0_20 = arith.constant 0 : index
    %34 = vector.load %arg8[%c0_18, %c0_19, %c0_20] : memref<1x8x8xf32, #tpu.memory_space<vmem>>, vector<1x8x8xf32>
    tpu.vector_store %arg8[%c0_18, %c0_19, %c0_20], %33 {strides = array<i32>} : memref<1x8x8xf32, #tpu.memory_space<vmem>>, vector<1x8x8xf32>,
    %c0_21 = arith.constant 0 : index
    %c0_22 = arith.constant 0 : index
    %c0_23 = arith.constant 0 : index
    %35 = vector.load %arg9[%c0_21, %c0_22, %c0_23] : memref<1x8x8xf32, #tpu.memory_space<vmem>>, vector<1x8x8xf32>
    %36 = vector.shape_cast %22 : vector<8x8xf32> to vector<1x8x8xf32>
    %cst_24 = arith.constant dense<0.000000e+00> : vector<8x8xf32>
    %37 = vector.multi_reduction <add>, %36, %cst_24 [0] : vector<1x8x8xf32> to vector<8x8xf32>
    %38 = vector.shape_cast %37 : vector<8x8xf32> to vector<1x8x8xf32>
    %39 = arith.addf %35, %38 : vector<1x8x8xf32>
    %c0_25 = arith.constant 0 : index
    %c0_26 = arith.constant 0 : index
    %c0_27 = arith.constant 0 : index
    %40 = vector.load %arg9[%c0_25, %c0_26, %c0_27] : memref<1x8x8xf32, #tpu.memory_space<vmem>>, vector<1x8x8xf32>
    tpu.vector_store %arg9[%c0_25, %c0_26, %c0_27], %39 {strides = array<i32>} : memref<1x8x8xf32, #tpu.memory_space<vmem>>, vector<1x8x8xf32>,
    %c0_28 = arith.constant 0 : index
    %c0_29 = arith.constant 0 : index
    %c0_30 = arith.constant 0 : index
    %41 = vector.load %arg10[%c0_28, %c0_29, %c0_30] : memref<1x8x8xf32, #tpu.memory_space<vmem>>, vector<1x8x8xf32>
    %42 = arith.mulf %11, %22 : vector<8x8xf32>
    %43 = vector.shape_cast %42 : vector<8x8xf32> to vector<1x8x8xf32>
    %cst_31 = arith.constant dense<0.000000e+00> : vector<8x8xf32>
    %44 = vector.multi_reduction <add>, %43, %cst_31 [0] : vector<1x8x8xf32> to vector<8x8xf32>
    %45 = vector.shape_cast %44 : vector<8x8xf32> to vector<1x8x8xf32>
    %46 = arith.addf %41, %45 : vector<1x8x8xf32>
    %c0_32 = arith.constant 0 : index
    %c0_33 = arith.constant 0 : index
    %c0_34 = arith.constant 0 : index
    %47 = vector.load %arg10[%c0_32, %c0_33, %c0_34] : memref<1x8x8xf32, #tpu.memory_space<vmem>>, vector<1x8x8xf32>
    tpu.vector_store %arg10[%c0_32, %c0_33, %c0_34], %46 {strides = array<i32>} : memref<1x8x8xf32, #tpu.memory_space<vmem>>, vector<1x8x8xf32>,
    %c0_35 = arith.constant 0 : index
    %c0_36 = arith.constant 0 : index
    %48 = vector.load %arg5[%c0_35, %c0_36] : memref<8x64xf32, #tpu.memory_space<vmem>>, vector<8x64xf32>
    %c0_37 = arith.constant 0 : index
    %c0_38 = arith.constant 0 : index
    %49 = vector.load %arg6[%c0_37, %c0_38] : memref<8x64xf32, #tpu.memory_space<vmem>>, vector<8x64xf32>
    %c0_39 = arith.constant 0 : index
    %c0_40 = arith.constant 0 : index
    %c0_41 = arith.constant 0 : index
    %50 = vector.load %arg11[%c0_39, %c0_40, %c0_41] : memref<1x8x64xf32, #tpu.memory_space<vmem>>, vector<1x8x64xf32>
    %cst_42 = arith.constant 1.000000e+00 : f32
    %51 = vector.broadcast %cst_42 : f32 to vector<8x64xf32>
    %52 = arith.addf %51, %49 : vector<8x64xf32>
    %53 = arith.mulf %48, %48 : vector<8x64xf32>
    %54 = arith.subf %52, %53 : vector<8x64xf32>
    %55 = math.exp %49 : vector<8x64xf32>
    %56 = arith.subf %54, %55 : vector<8x64xf32>
    %57 = vector.shape_cast %56 : vector<8x64xf32> to vector<1x8x64xf32>
    %cst_43 = arith.constant dense<0.000000e+00> : vector<8x64xf32>
    %58 = vector.multi_reduction <add>, %57, %cst_43 [0] : vector<1x8x64xf32> to vector<8x64xf32>
    %59 = vector.shape_cast %58 : vector<8x64xf32> to vector<1x8x64xf32>
    %60 = arith.addf %50, %59 : vector<1x8x64xf32>
    %c0_44 = arith.constant 0 : index
    %c0_45 = arith.constant 0 : index
    %c0_46 = arith.constant 0 : index
    %61 = vector.load %arg11[%c0_44, %c0_45, %c0_46] : memref<1x8x64xf32, #tpu.memory_space<vmem>>, vector<1x8x64xf32>
    tpu.vector_store %arg11[%c0_44, %c0_45, %c0_46], %60 {strides = array<i32>} : memref<1x8x64xf32, #tpu.memory_space<vmem>>, vector<1x8x64xf32>,
    return
  }
  func.func @transform_0(%arg0: i32, %arg1: i32, %arg2: i32) -> (i32, i32) {
    %c1_i32 = arith.constant 1 : i32
    %0 = arith.muli %arg2, %c1_i32 : i32
    %c1_i32_0 = arith.constant 1 : i32
    %1 = arith.muli %arg0, %c1_i32_0 : i32
    %2 = arith.addi %0, %1 : i32
    %3 = arith.addi %2, %arg1 : i32
    %c0_i32 = arith.constant 0 : i32
    %c0_i32_1 = arith.constant 0 : i32
    return %3, %c0_i32 : i32, i32
  }
  func.func @transform_1(%arg0: i32, %arg1: i32, %arg2: i32) -> (i32, i32) {
    %c1_i32 = arith.constant 1 : i32
    %0 = arith.muli %arg0, %c1_i32 : i32
    %1 = arith.addi %0, %arg1 : i32
    %c0_i32 = arith.constant 0 : i32
    %c0_i32_0 = arith.constant 0 : i32
    return %1, %c0_i32 : i32, i32
  }
  func.func @transform_2(%arg0: i32, %arg1: i32, %arg2: i32) -> (i32, i32) {
    %c1_i32 = arith.constant 1 : i32
    %0 = arith.muli %arg2, %c1_i32 : i32
    %c1_i32_0 = arith.constant 1 : i32
    %1 = arith.muli %arg0, %c1_i32_0 : i32
    %2 = arith.addi %0, %1 : i32
    %3 = arith.addi %2, %arg1 : i32
    %c0_i32 = arith.constant 0 : i32
    %c0_i32_1 = arith.constant 0 : i32
    return %3, %c0_i32 : i32, i32
  }
  func.func @transform_3(%arg0: i32, %arg1: i32, %arg2: i32) -> (i32, i32) {
    %c1_i32 = arith.constant 1 : i32
    %0 = arith.muli %arg2, %c1_i32 : i32
    %c1_i32_0 = arith.constant 1 : i32
    %1 = arith.muli %arg0, %c1_i32_0 : i32
    %2 = arith.addi %0, %1 : i32
    %3 = arith.addi %2, %arg1 : i32
    %c0_i32 = arith.constant 0 : i32
    %c0_i32_1 = arith.constant 0 : i32
    return %3, %c0_i32 : i32, i32
  }
  func.func @transform_4(%arg0: i32, %arg1: i32, %arg2: i32) -> (i32, i32, i32) {
    %c0_i32 = arith.constant 0 : i32
    %c0_i32_0 = arith.constant 0 : i32
    %c0_i32_1 = arith.constant 0 : i32
    return %arg0, %c0_i32, %c0_i32_0 : i32, i32, i32
  }
  func.func @transform_5(%arg0: i32, %arg1: i32, %arg2: i32) -> (i32, i32, i32) {
    %c0_i32 = arith.constant 0 : i32
    %c0_i32_0 = arith.constant 0 : i32
    %c0_i32_1 = arith.constant 0 : i32
    return %arg0, %c0_i32, %c0_i32_0 : i32, i32, i32
  }
  func.func @transform_6(%arg0: i32, %arg1: i32, %arg2: i32) -> (i32, i32, i32) {
    %c0_i32 = arith.constant 0 : i32
    %c0_i32_0 = arith.constant 0 : i32
    %c0_i32_1 = arith.constant 0 : i32
    return %arg0, %c0_i32, %c0_i32_0 : i32, i32, i32
  }
  func.func @transform_7(%arg0: i32, %arg1: i32, %arg2: i32) -> (i32, i32, i32) {
    %c0_i32 = arith.constant 0 : i32
    %c0_i32_0 = arith.constant 0 : i32
    %c0_i32_1 = arith.constant 0 : i32
    return %arg0, %c0_i32, %c0_i32_0 : i32, i32, i32
  }
  func.func @transform_8(%arg0: i32, %arg1: i32, %arg2: i32) -> (i32, i32, i32) {
    %c0_i32 = arith.constant 0 : i32
    %c0_i32_0 = arith.constant 0 : i32
    %c0_i32_1 = arith.constant 0 : i32
    return %arg0, %c0_i32, %c0_i32_0 : i32, i32, i32
  }
}

</mosaic_0001>

<llo_original>
// kernel: vloss_pallas.1
$region0: #{vloss_pallas.1}
  #allocation0 [shape = 'u32[]', space=smem, size = 0x4, offset = 0x4, fixed_abs, tag = 'smem constant byte address 0x4 - core index']
  #allocation1 [shape = 'u32[144,128]{1,0:T(1,128)}', space=vmem, size = 0x12000, scoped, tag = 'internal scratch']
  %s0 = inlined_call_operand.vmem [shape: f32[8,8], index: 0, kind: input, shape index: {}]
  %s1 = inlined_call_operand.vmem [shape: f32[8,8], index: 1, kind: input, shape index: {}]
  %s2 = inlined_call_operand.vmem [shape: f32[8,64], index: 2, kind: input, shape index: {}]
  %s3 = inlined_call_operand.vmem [shape: f32[8,64], index: 3, kind: input, shape index: {}]
  %s4 = inlined_call_operand.vmem [shape: f32[1,8,8], index: 4, kind: output, shape index: {0}]
  %s5 = inlined_call_operand.vmem [shape: f32[1,8,8], index: 5, kind: output, shape index: {1}]
  %s6 = inlined_call_operand.vmem [shape: f32[1,8,8], index: 6, kind: output, shape index: {2}]
  %s7 = inlined_call_operand.vmem [shape: f32[1,8,8], index: 7, kind: output, shape index: {3}]
  %s8 = inlined_call_operand.vmem [shape: f32[1,8,64], index: 8, kind: output, shape index: {4}]
  %9 = xla_tuple %s4, %s5, %s6, %s7, %s8
  %s10 = sld [smem:[#allocation0]]
  $region62: #{vloss_pallas.1} parent=0
    _
  %s12 = ssub.s32 1, %s10
  %s13 = scalar_select 0, %s12, %s10
  // Predicated region
  $region2: #{vloss_pallas.1} parent=0 // pred_check
    _
  $region3: #{vloss_pallas.1} parent=0 // pred_check_branch
    %15 = sbr.rel (0) target = $region5
  $region4: #{vloss_pallas.1} parent=0 // pred_region
    %s16 = sadd.s32 0, 0
    %s17 = sadd.s32 %s16, 0
    %p18 = scmp.lt.s32.totalorder %s17, 0
    %s19 = scalar_select %p18, %s17, 0
    %s20 = smul.addr %s19, 8
    %s21 = scalar_lea.vmem %s0, %s20
    %s22 = sadd.s32 0, 0
    %s23 = sadd.s32 %s22, 0
  $region5: #{vloss_pallas.1} parent=0 // pred_fallthru
    _
  // Predicated region
  $region6: #{vloss_pallas.1} parent=0 // pred_check
    _
  $region7: #{vloss_pallas.1} parent=0 // pred_check_branch
    %25 = sbr.rel (0) target = $region9
  $region8: #{vloss_pallas.1} parent=0 // pred_region
    %s26 = sadd.s32 0, 0
    %p27 = scmp.lt.s32.totalorder %s26, 0
    %s28 = scalar_select %p27, %s26, 0
    %s29 = smul.addr %s28, 8
    %s30 = scalar_lea.vmem %s1, %s29
    %s31 = sadd.s32 0, 0
  $region9: #{vloss_pallas.1} parent=0 // pred_fallthru
    _
  // Predicated region
  $region10: #{vloss_pallas.1} parent=0 // pred_check
    _
  $region11: #{vloss_pallas.1} parent=0 // pred_check_branch
    %33 = sbr.rel (0) target = $region13
  $region12: #{vloss_pallas.1} parent=0 // pred_region
    %s34 = sadd.s32 0, 0
    %s35 = sadd.s32 %s34, 0
    %p36 = scmp.lt.s32.totalorder %s35, 0
    %s37 = scalar_select %p36, %s35, 0
    %s38 = smul.addr %s37, 8
    %s39 = scalar_lea.vmem %s2, %s38
    %s40 = sadd.s32 0, 0
    %s41 = sadd.s32 %s40, 0
  $region13: #{vloss_pallas.1} parent=0 // pred_fallthru
    _
  // Predicated region
  $region14: #{vloss_pallas.1} parent=0 // pred_check
    _
  $region15: #{vloss_pallas.1} parent=0 // pred_check_branch
    %43 = sbr.rel (0) target = $region17
  $region16: #{vloss_pallas.1} parent=0 // pred_region
    %s44 = sadd.s32 0, 0
    %s45 = sadd.s32 %s44, 0
    %p46 = scmp.lt.s32.totalorder %s45, 0
    %s47 = scalar_select %p46, %s45, 0
    %s48 = smul.addr %s47, 8
    %s49 = scalar_lea.vmem %s3, %s48
    %s50 = sadd.s32 0, 0
    %s51 = sadd.s32 %s50, 0
  $region17: #{vloss_pallas.1} parent=0 // pred_fallthru
    _
  %s52 = sadd.s32 0, 0
  %s53 = sadd.s32 %s52, 0
  %p54 = scmp.lt.s32.totalorder %s53, 0
  %s55 = scalar_select %p54, %s53, 0
  %s56 = smul.addr %s55, 8
  %s57 = scalar_lea.vmem %s0, %s56
  %s58 = sadd.s32 0, 0
  %p59 = scmp.lt.s32.totalorder %s58, 0
  %s60 = scalar_select %p59, %s58, 0
  %s61 = smul.addr %s60, 8
  %s62 = scalar_lea.vmem %s1, %s61
  %s63 = sadd.s32 0, 0
  %s64 = sadd.s32 %s63, 0
  %p65 = scmp.lt.s32.totalorder %s64, 0
  %s66 = scalar_select %p65, %s64, 0
  %s67 = smul.addr %s66, 8
  %s68 = scalar_lea.vmem %s2, %s67
  %s69 = sadd.s32 0, 0
  %s70 = sadd.s32 %s69, 0
  %p71 = scmp.lt.s32.totalorder %s70, 0
  %s72 = scalar_select %p71, %s70, 0
  %s73 = smul.addr %s72, 8
  %s74 = scalar_lea.vmem %s3, %s73
  %s75 = sadd.s32 0, 0
  %s76 = sadd.s32 %s75, 0
  %p77 = scmp.lt.s32.totalorder %s76, 0
  %s78 = scalar_select %p77, %s76, 0
  %s79 = smul.addr %s78, 8
  %s80 = scalar_lea.vmem %s0, %s79
  %s81 = sadd.s32 0, 0
  %s82 = sadd.s32 %s81, 0
  %s83 = sadd.s32 0, 0
  %p84 = scmp.lt.s32.totalorder %s83, 0
  %s85 = scalar_select %p84, %s83, 0
  %s86 = smul.addr %s85, 8
  %s87 = scalar_lea.vmem %s1, %s86
  %s88 = sadd.s32 0, 0
  %s89 = sadd.s32 0, 0
  %s90 = sadd.s32 %s89, 0
  %p91 = scmp.lt.s32.totalorder %s90, 0
  %s92 = scalar_select %p91, %s90, 0
  %s93 = smul.addr %s92, 8
  %s94 = scalar_lea.vmem %s2, %s93
  %s95 = sadd.s32 0, 0
  %s96 = sadd.s32 %s95, 0
  %s97 = sadd.s32 0, 0
  %s98 = sadd.s32 %s97, 0
  %p99 = scmp.lt.s32.totalorder %s98, 0
  %s100 = scalar_select %p99, %s98, 0
  %s101 = smul.addr %s100, 8
  %s102 = scalar_lea.vmem %s3, %s101
  %s103 = sadd.s32 0, 0
  %s104 = sadd.s32 %s103, 0
  %p105 = scmp.eq.s32.totalorder 0, 0
  %p106 = scmp.eq.s32.totalorder 0, 0
  %p107 = pnand %p105, %p106
  %p108 = pneg %p107
  // Predicated region
  $region18: #{vloss_pallas.1} parent=0 // pred_check
    _
  $region19: #{vloss_pallas.1} parent=0 // pred_check_branch
    %110 = sbr.rel (%p107) target = $region21
  $region20: #{vloss_pallas.1} parent=0 // pred_region
    %vm111 = vcmask 64512
    %112 = vst.msk [vmem:[%s4] sm:$0xff] %vm111, 0.0
    %113 = vst.msk [vmem:[%s5] sm:$0xff] %vm111, 0.0
    %114 = vst.msk [vmem:[%s6] sm:$0xff] %vm111, 0.0
    %115 = vst.msk [vmem:[%s7] sm:$0xff] %vm111, 0.0
    %vm116 = vcmask 523264
    %117 = vst.msk [vmem:[%s8] sm:$0xff] %vm116, 0.0
  $region21: #{vloss_pallas.1} parent=0 // pred_fallthru
    _
  %v118 = vld [vmem:[%s80] sm:$0xff]
  %v119 = vld [vmem:[%s87] sm:$0xff]
  %vm120 = vcmp.eq.f32.partialorder %v119, %v119
  %v121 = vsel %vm120, 1, 0
  %v122 = vcvt.s32.f32 %v121
  %v123 = vsel %vm120, %v119, 0.0
  %v124 = vand.u32 2147483647, %v118
  %v125 = vsub.f32 0.0, %v124
  %v126 = vmul.f32 %v125, 1.442695
  %v127 = vpow.pop %v126
  %v128 = vadd.f32 %v127, 1.0
  %v129 = vlog2.pop %v128
  %v130 = vmul.f32 %v129, 0.6931472
  %v131 = vmul.f32 -0.5, %v127
  %v132 = vadd.f32 %v131, 1.0
  %v133 = vmul.f32 %v132, %v127
  %v134 = vand.u32 2147483647, %v127
  %vm135 = vcmp.lt.f32.partialorder %v134, 0.0004427343
  %v136 = vsel %vm135, %v133, %v130
  %v137 = vmax.f32 %v118, 0.0
  %v138 = vmul.f32 %v118, %v123
  %v139 = vsub.f32 %v137, %v138
  %v140 = vadd.f32 %v139, %v136
  %v141 = vmul.f32 %v140, %v122
  %v142 = vld [vmem:[%s4] sm:$0xff]
  %v143 = vadd.f32 %v123, 0.0
  %v144 = vadd.f32 %v142, %v143
  %vm145 = vcmask 64512
  %146 = vst.msk [vmem:[%s4] sm:$0xff] %vm145, %v144
  %v147 = vld [vmem:[%s5] sm:$0xff]
  %v148 = vadd.f32 %v122, 0.0
  %v149 = vadd.f32 %v147, %v148
  %150 = vst.msk [vmem:[%s5] sm:$0xff] %vm145, %v149
  %v151 = vld [vmem:[%s6] sm:$0xff]
  %v152 = vadd.f32 %v141, 0.0
  %v153 = vadd.f32 %v151, %v152
  %154 = vst.msk [vmem:[%s6] sm:$0xff] %vm145, %v153
  %v155 = vld [vmem:[%s7] sm:$0xff]
  %v156 = vmul.f32 %v123, %v141
  %v157 = vadd.f32 %v156, 0.0
  %v158 = vadd.f32 %v155, %v157
  %159 = vst.msk [vmem:[%s7] sm:$0xff] %vm145, %v158
  %v160 = vld [vmem:[%s94] sm:$0xff]
  %v161 = vld [vmem:[%s102] sm:$0xff]
  %v162 = vld [vmem:[%s8] sm:$0xff]
  %v163 = vadd.f32 %v161, 1.0
  %v164 = vmul.f32 %v160, %v160
  %v165 = vsub.f32 %v163, %v164
  %v166 = vmul.f32 %v161, 1.442695
  %v167 = vpow.pop %v166
  %v168 = vsub.f32 %v165, %v167
  %v169 = vadd.f32 %v168, 0.0
  %v170 = vadd.f32 %v162, %v169
  %vm171 = vcmask 523264
  %172 = vst.msk [vmem:[%s8] sm:$0xff] %vm171, %v170
  // Predicated region
  $region22: #{vloss_pallas.1} parent=0 // pred_check
    _
  $region23: #{vloss_pallas.1} parent=0 // pred_check_branch
    %174 = sbr.rel (0) target = $region25
  $region24: #{vloss_pallas.1} parent=0 // pred_region
    _
  $region25: #{vloss_pallas.1} parent=0 // pred_fallthru
    _
  // Predicated region
  $region26: #{vloss_pallas.1} parent=0 // pred_check
    _
  $region27: #{vloss_pallas.1} parent=0 // pred_check_branch
    %176 = sbr.rel (0) target = $region29
  $region28: #{vloss_pallas.1} parent=0 // pred_region
    _
  $region29: #{vloss_pallas.1} parent=0 // pred_fallthru
    _
  // Predicated region
  $region30: #{vloss_pallas.1} parent=0 // pred_check
    _
  $region31: #{vloss_pallas.1} parent=0 // pred_check_branch
    %178 = sbr.rel (0) target = $region33
  $region32: #{vloss_pallas.1} parent=0 // pred_region
    _
  $region33: #{vloss_pallas.1} parent=0 // pred_fallthru
    _
  // Predicated region
  $region34: #{vloss_pallas.1} parent=0 // pred_check
    _
  $region35: #{vloss_pallas.1} parent=0 // pred_check_branch
    %180 = sbr.rel (0) target = $region37
  $region36: #{vloss_pallas.1} parent=0 // pred_region
    _
  $region37: #{vloss_pallas.1} parent=0 // pred_fallthru
    _
  // Predicated region
  $region38: #{vloss_pallas.1} parent=0 // pred_check
    _
  $region39: #{vloss_pallas.1} parent=0 // pred_check_branch
    %182 = sbr.rel (0) target = $region41
  $region40: #{vloss_pallas.1} parent=0 // pred_region
    _
  $region41: #{vloss_pallas.1} parent=0 // pred_fallthru
    _
  // Predicated region
  $region42: #{vloss_pallas.1} parent=0 // pred_check
    _
  $region43: #{vloss_pallas.1} parent=0 // pred_check_branch
    %184 = sbr.rel (0) target = $region45
  $region44: #{vloss_pallas.1} parent=0 // pred_region
    _
  $region45: #{vloss_pallas.1} parent=0 // pred_fallthru
    _
  // Predicated region
  $region46: #{vloss_pallas.1} parent=0 // pred_check
    _
  $region47: #{vloss_pallas.1} parent=0 // pred_check_branch
    %186 = sbr.rel (0) target = $region49
  $region48: #{vloss_pallas.1} parent=0 // pred_region
    _
  $region49: #{vloss_pallas.1} parent=0 // pred_fallthru
    _
  // Predicated region
  $region50: #{vloss_pallas.1} parent=0 // pred_check
    _
  $region51: #{vloss_pallas.1} parent=0 // pred_check_branch
    %188 = sbr.rel (0) target = $region53
  $region52: #{vloss_pallas.1} parent=0 // pred_region
    _
  $region53: #{vloss_pallas.1} parent=0 // pred_fallthru
    _
  // Predicated region
  $region54: #{vloss_pallas.1} parent=0 // pred_check
    _
  $region55: #{vloss_pallas.1} parent=0 // pred_check_branch
    %190 = sbr.rel (0) target = $region57
  $region56: #{vloss_pallas.1} parent=0 // pred_region
    _
  $region57: #{vloss_pallas.1} parent=0 // pred_fallthru
    _
  // Predicated region
  $region58: #{vloss_pallas.1} parent=0 // pred_check
    _
  $region59: #{vloss_pallas.1} parent=0 // pred_check_branch
    %192 = sbr.rel (0) target = $region61
  $region60: #{vloss_pallas.1} parent=0 // pred_region
    _
  $region61: #{vloss_pallas.1} parent=0 // pred_fallthru
    _

</llo_original>
